<compile_context>
chip_gen: v6e
topology: v6e:2x2x1
jax: 0.10.0
libtpu: 0.0.40
codegen_flags: <defaults>
</compile_context>

<pallas_src>
import functools

import jax
import jax.numpy as jnp
from jax.experimental import pallas as pl
from jax.experimental.pallas import tpu as pltpu

OBS_DIMS = 261
ACTION_DIMS = 2
LATENT_DIMS = 2
FC1_DIMS = 6
FEATURES_DIM = 18
HID1 = 100
HEAD_DIMS = 2 * ACTION_DIMS              # fused (mu | logsigma)
OUT_COLS = FEATURES_DIM + HEAD_DIMS      # fused (enc | mu | logsigma) = 22


def actor_kernel(obs_ref, skl_ref,
                 w1_ref, b1_ref,
                 w2_ref, b2_ref,
                 w3e_ref, w3s_ref, b3_ref,
                 wh_ref, bh_ref,
                 out_ref):
    # In-kernel cast (cheap VPU op hidden under the obs DMA).  Pipelines that
    # already store obs in bf16 upstream halve the streamed bytes again.
    obs = obs_ref[...].astype(jnp.bfloat16)     # [TB, 261]
    skl = skl_ref[...]                          # [TB, 2]  f32

    # en_linear_1 + ReLU (dominant matmul: bf16 operands, f32 accumulate)
    h1 = jnp.dot(obs, w1_ref[...], preferred_element_type=jnp.float32) + b1_ref[...]
    h1 = jnp.maximum(h1, 0.0)

    # en_linear_2 -> encoded_state (bf16 x bf16, f32 accumulate)
    enc = jnp.dot(h1.astype(jnp.bfloat16), w2_ref[...],
                  preferred_element_type=jnp.float32) + b2_ref[...]

    # fc1 over cat(encoded_state, skill): enc part on the MXU, the 2-column
    # skill part as VPU broadcast-FMAs (avoids a padded K=2 MXU pass).
    w3s = w3s_ref[...]                          # [2, 6]
    x = (jnp.dot(enc, w3e_ref[...], preferred_element_type=jnp.float32)
         + skl[:, 0:1] * w3s[0:1, :]
         + skl[:, 1:2] * w3s[1:2, :]
         + b3_ref[...])
    x = jnp.maximum(x, 0.0)

    # Fused mu / logsigma head: W_head = [W_mu | W_logsigma]  (6 -> 4)
    heads = jnp.dot(x, wh_ref[...], preferred_element_type=jnp.float32) + bh_ref[...]

    # Single fused, lane-dense-as-possible output tile: [enc | mu | logsigma]
    out_ref[...] = jnp.concatenate([enc, heads], axis=-1).astype(out_ref.dtype)


def _round_up(x, m):
    return ((x + m - 1) // m) * m


def _vmem_limit_bytes(tb):
    # Rough double-buffered footprint estimate + headroom, clamped to ~3/4 of
    # the chip's physical VMEM (64 MiB/TC on v7x, 128 MiB on v5e/v6e).
    est = 16 * 1024 * 1024 + tb * 10 * 1024
    try:
        cap = int(pltpu.get_tpu_info().vmem_capacity_bytes) * 3 // 4
    except Exception:                    # conservative default, safe everywhere
        cap = 48 * 1024 * 1024
    return int(min(est, cap))


@functools.partial(jax.jit, static_argnames=("tb",))
def actor_forward(observation, skill, params, *, tb=4096):
    """observation: [B, 261] f32, skill: [B, 2] f32
       -> (mu [B, 2], logsigma [B, 2], encoded_state [B, 18]), all f32."""
    B = observation.shape[0]
    (w1, b1, w2, b2, w3e, w3s, b3, wh, bh) = params

    # Batch tile: multiple of 8 sublanes, clamped so the grid has >=2 steps
    # whenever B allows it (both v7x TensorCores get work).  No input padding:
    # the partial tail block is handled by Pallas' masked reads/writes.
    tb = max(8, min(tb, _round_up(pl.cdiv(B, 2), 8)))
    grid = (pl.cdiv(B, tb),)

    def batch_spec(feat):
        return pl.BlockSpec((tb, feat), lambda i: (i, 0))

    def resident_spec(arr):              # full-array VMEM-resident block
        return pl.BlockSpec(arr.shape, lambda i: (0, 0))

    in_specs = ([batch_spec(OBS_DIMS), batch_spec(LATENT_DIMS)]
                + [resident_spec(w) for w in (w1, b1, w2, b2, w3e, w3s, b3, wh, bh)])

    # TODO(synk): emit the fused output in bf16 if downstream tolerates it
    # (halves the write traffic of this HBM-bound kernel).
    fused = pl.pallas_call(
        actor_kernel,
        out_shape=jax.ShapeDtypeStruct((B, OUT_COLS), jnp.float32),
        grid=grid,
        in_specs=in_specs,
        out_specs=batch_spec(OUT_COLS),
        compiler_params=pltpu.CompilerParams(
            dimension_semantics=("parallel",),
            vmem_limit_bytes=_vmem_limit_bytes(tb)),
    )(observation, skill, w1, b1, w2, b2, w3e, w3s, b3, wh, bh)

    encoded_state = fused[:, :FEATURES_DIM]
    mu = fused[:, FEATURES_DIM:FEATURES_DIM + ACTION_DIMS]
    logsigma = fused[:, FEATURES_DIM + ACTION_DIMS:]
    return mu, logsigma, encoded_state


def xavier_uniform(key, out_f, in_f):
    # matches nn.init.xavier_uniform_ on a (out_f, in_f) weight
    bound = jnp.sqrt(6.0 / (in_f + out_f))
    return jax.random.uniform(key, (out_f, in_f), jnp.float32, -bound, bound)


def linear_bias(key, in_f, out_f):
    # PyTorch Linear default bias init: U(-1/sqrt(in_f), 1/sqrt(in_f))
    bound = 1.0 / jnp.sqrt(in_f)
    return jax.random.uniform(key, (1, out_f), jnp.float32, -bound, bound)


def make_params(key):
    ks = jax.random.split(key, 10)
    w1 = xavier_uniform(ks[0], HID1, OBS_DIMS)                    # (100, 261)
    b1 = linear_bias(ks[1], OBS_DIMS, HID1)                       # (1, 100)
    w2 = xavier_uniform(ks[2], FEATURES_DIM, HID1)                # (18, 100)
    b2 = linear_bias(ks[3], HID1, FEATURES_DIM)                   # (1, 18)
    fc1_in = FEATURES_DIM + LATENT_DIMS                           # 20
    w3 = xavier_uniform(ks[4], FC1_DIMS, fc1_in)                  # (6, 20)
    b3 = linear_bias(ks[5], fc1_in, FC1_DIMS)                     # (1, 6)
    wmu = xavier_uniform(ks[6], ACTION_DIMS, FC1_DIMS)            # (2, 6)
    bmu = linear_bias(ks[7], FC1_DIMS, ACTION_DIMS)               # (1, 2)
    wls = xavier_uniform(ks[8], ACTION_DIMS, FC1_DIMS)            # (2, 6)
    bls = linear_bias(ks[9], FC1_DIMS, ACTION_DIMS)               # (1, 2)

    # pre-transpose to [in, out]; bf16 for the two MXU-fed encoder weights
    w1_t = w1.T.astype(jnp.bfloat16)                              # (261, 100) bf16
    w2_t = w2.T.astype(jnp.bfloat16)                              # (100, 18)  bf16
    w3_t = w3.T                                                   # (20, 6)
    w3e = w3_t[:FEATURES_DIM, :]                                  # (18, 6)
    w3s = w3_t[FEATURES_DIM:, :]                                  # (2, 6)
    wh = jnp.concatenate([wmu.T, wls.T], axis=1)                  # (6, 4)
    bh = jnp.concatenate([bmu, bls], axis=1)                      # (1, 4)
    return (w1_t, b1, w2_t, b2, w3e, w3s, b3, wh, bh)


def reference_forward_f32(observation, skill, params):
    """Pure float32 reference — what the PyTorch module computes."""
    (w1, b1, w2, b2, w3e, w3s, b3, wh, bh) = params
    hi = jax.lax.Precision.HIGHEST
    h = jnp.dot(observation, w1.astype(jnp.float32), precision=hi) + b1
    h = jnp.maximum(h, 0.0)
    enc = jnp.dot(h, w2.astype(jnp.float32), precision=hi) + b2
    x = jnp.concatenate([enc, skill], axis=-1)
    w3 = jnp.concatenate([w3e, w3s], axis=0)
    x = jnp.maximum(jnp.dot(x, w3, precision=hi) + b3, 0.0)
    heads = jnp.dot(x, wh, precision=hi) + bh
    return heads[:, :ACTION_DIMS], heads[:, ACTION_DIMS:], enc


# TODO(synk): sample_normal (Normal + TanhTransform rsample / log_prob) is
# host-side distribution logic, out of scope for the forward-pass kernel.

if __name__ == "__main__":
    key = jax.random.PRNGKey(0)
    k_obs, k_skl, k_par = jax.random.split(key, 3)

    B = 12   # deliberately not a multiple of the batch tile: exercises the masked tail
    observation = jax.random.normal(k_obs, (B, OBS_DIMS), jnp.float32)
    skill = jax.random.normal(k_skl, (B, LATENT_DIMS), jnp.float32)
    params = make_params(k_par)

    mu, logsigma, enc = actor_forward(observation, skill, params)
    mu, logsigma, enc = jax.block_until_ready((mu, logsigma, enc))

    assert mu.shape == (B, ACTION_DIMS)
    assert logsigma.shape == (B, ACTION_DIMS)
    assert enc.shape == (B, FEATURES_DIM)

    # Bound drift vs the true float32 model: layers 1-2 run on the MXU in bf16
    # with f32 accumulation, so expected drift is ~1e-3..1e-2.
    mu_r, ls_r, enc_r = reference_forward_f32(observation, skill, params)
    assert jnp.allclose(enc, enc_r, atol=3e-2, rtol=3e-2), "encoded_state mismatch"
    assert jnp.allclose(mu, mu_r, atol=3e-2, rtol=3e-2), "mu mismatch"
    assert jnp.allclose(logsigma, ls_r, atol=3e-2, rtol=3e-2), "logsigma mismatch"

    print("KERNEL_OK")
</pallas_src>

<mosaic_0001>
module attributes {stable_mosaic.version = 11 : i64} {
  func.func @actor_kernel(%arg0: i32, %arg1: memref<8x261xf32, #tpu.memory_space<vmem>>, %arg2: memref<8x2xf32, #tpu.memory_space<vmem>>, %arg3: memref<261x100xbf16, #tpu.memory_space<vmem>>, %arg4: memref<1x100xf32, #tpu.memory_space<vmem>>, %arg5: memref<100x18xbf16, #tpu.memory_space<vmem>>, %arg6: memref<1x18xf32, #tpu.memory_space<vmem>>, %arg7: memref<18x6xf32, #tpu.memory_space<vmem>>, %arg8: memref<2x6xf32, #tpu.memory_space<vmem>>, %arg9: memref<1x6xf32, #tpu.memory_space<vmem>>, %arg10: memref<6x4xf32, #tpu.memory_space<vmem>>, %arg11: memref<1x4xf32, #tpu.memory_space<vmem>>, %arg12: memref<8x22xf32, #tpu.memory_space<vmem>>) attributes {dimension_semantics = [#tpu.dimension_semantics<parallel>], iteration_bounds = array<i64: 2>, scalar_prefetch = 0 : i64, scratch_operands = 0 : i64, tpu.core_type = #tpu.core_type<tc>, window_params = [{transform_indices = @transform_0, window_bounds = array<i64: 8, 261>}, {transform_indices = @transform_1, window_bounds = array<i64: 8, 2>}, {pipeline_mode = #tpu.pipeline_mode<synchronous>, transform_indices = @transform_2, window_bounds = array<i64: 261, 100>}, {pipeline_mode = #tpu.pipeline_mode<synchronous>, transform_indices = @transform_3, window_bounds = array<i64: 1, 100>}, {pipeline_mode = #tpu.pipeline_mode<synchronous>, transform_indices = @transform_4, window_bounds = array<i64: 100, 18>}, {pipeline_mode = #tpu.pipeline_mode<synchronous>, transform_indices = @transform_5, window_bounds = array<i64: 1, 18>}, {pipeline_mode = #tpu.pipeline_mode<synchronous>, transform_indices = @transform_6, window_bounds = array<i64: 18, 6>}, {pipeline_mode = #tpu.pipeline_mode<synchronous>, transform_indices = @transform_7, window_bounds = array<i64: 2, 6>}, {pipeline_mode = #tpu.pipeline_mode<synchronous>, transform_indices = @transform_8, window_bounds = array<i64: 1, 6>}, {pipeline_mode = #tpu.pipeline_mode<synchronous>, transform_indices = @transform_9, window_bounds = array<i64: 6, 4>}, {pipeline_mode = #tpu.pipeline_mode<synchronous>, transform_indices = @transform_10, window_bounds = array<i64: 1, 4>}, {transform_indices = @transform_11, window_bounds = array<i64: 8, 22>}]} {
    %c0 = arith.constant 0 : index
    %c0_0 = arith.constant 0 : index
    %0 = vector.load %arg1[%c0, %c0_0] : memref<8x261xf32, #tpu.memory_space<vmem>>, vector<8x261xf32>
    %1 = arith.truncf %0 : vector<8x261xf32> to vector<8x261xbf16>
    %c0_1 = arith.constant 0 : index
    %c0_2 = arith.constant 0 : index
    %2 = vector.load %arg2[%c0_1, %c0_2] : memref<8x2xf32, #tpu.memory_space<vmem>>, vector<8x2xf32>
    %c0_3 = arith.constant 0 : index
    %c0_4 = arith.constant 0 : index
    %3 = vector.load %arg3[%c0_3, %c0_4] : memref<261x100xbf16, #tpu.memory_space<vmem>>, vector<261x100xbf16>
    %cst = arith.constant dense<0.000000e+00> : vector<8x100xf32>
    %4 = tpu.matmul %1, %3, %cst {dimension_numbers = #tpu.dot_dimension_numbers<[1], [0], [0], [1], [0, 0, 1, 1], [], []>} : vector<8x261xbf16>, vector<261x100xbf16>, vector<8x100xf32> -> vector<8x100xf32>
    %c0_5 = arith.constant 0 : index
    %c0_6 = arith.constant 0 : index
    %5 = vector.load %arg4[%c0_5, %c0_6] : memref<1x100xf32, #tpu.memory_space<vmem>>, vector<1x100xf32>
    %6 = vector.broadcast %5 : vector<1x100xf32> to vector<8x100xf32>
    %7 = arith.addf %4, %6 : vector<8x100xf32>
    %cst_7 = arith.constant 0.000000e+00 : f32
    %8 = vector.broadcast %cst_7 : f32 to vector<8x100xf32>
    %9 = arith.maximumf %7, %8 : vector<8x100xf32>
    %10 = arith.truncf %9 : vector<8x100xf32> to vector<8x100xbf16>
    %c0_8 = arith.constant 0 : index
    %c0_9 = arith.constant 0 : index
    %11 = vector.load %arg5[%c0_8, %c0_9] : memref<100x18xbf16, #tpu.memory_space<vmem>>, vector<100x18xbf16>
    %cst_10 = arith.constant dense<0.000000e+00> : vector<8x18xf32>
    %12 = tpu.matmul %10, %11, %cst_10 {dimension_numbers = #tpu.dot_dimension_numbers<[1], [0], [0], [1], [0, 0, 1, 1], [], []>} : vector<8x100xbf16>, vector<100x18xbf16>, vector<8x18xf32> -> vector<8x18xf32>
    %c0_11 = arith.constant 0 : index
    %c0_12 = arith.constant 0 : index
    %13 = vector.load %arg6[%c0_11, %c0_12] : memref<1x18xf32, #tpu.memory_space<vmem>>, vector<1x18xf32>
    %14 = vector.broadcast %13 : vector<1x18xf32> to vector<8x18xf32>
    %15 = arith.addf %12, %14 : vector<8x18xf32>
    %c0_13 = arith.constant 0 : index
    %c0_14 = arith.constant 0 : index
    %16 = vector.load %arg8[%c0_13, %c0_14] : memref<2x6xf32, #tpu.memory_space<vmem>>, vector<2x6xf32>
    %c0_15 = arith.constant 0 : index
    %c0_16 = arith.constant 0 : index
    %17 = vector.load %arg7[%c0_15, %c0_16] : memref<18x6xf32, #tpu.memory_space<vmem>>, vector<18x6xf32>
    %cst_17 = arith.constant dense<0.000000e+00> : vector<8x6xf32>
    %18 = tpu.matmul %15, %17, %cst_17 {dimension_numbers = #tpu.dot_dimension_numbers<[1], [0], [0], [1], [0, 0, 1, 1], [], []>} : vector<8x18xf32>, vector<18x6xf32>, vector<8x6xf32> -> vector<8x6xf32>
    %19 = vector.extract_strided_slice %2 {offsets = [0, 0], sizes = [8, 1], strides = [1, 1]} : vector<8x2xf32> to vector<8x1xf32>
    %20 = vector.extract_strided_slice %16 {offsets = [0, 0], sizes = [1, 6], strides = [1, 1]} : vector<2x6xf32> to vector<1x6xf32>
    %21 = vector.broadcast %19 : vector<8x1xf32> to vector<8x6xf32>
    %22 = vector.broadcast %20 : vector<1x6xf32> to vector<8x6xf32>
    %23 = arith.mulf %21, %22 : vector<8x6xf32>
    %24 = arith.addf %18, %23 : vector<8x6xf32>
    %25 = vector.extract_strided_slice %2 {offsets = [0, 1], sizes = [8, 1], strides = [1, 1]} : vector<8x2xf32> to vector<8x1xf32>
    %26 = vector.extract_strided_slice %16 {offsets = [1, 0], sizes = [1, 6], strides = [1, 1]} : vector<2x6xf32> to vector<1x6xf32>
    %27 = vector.broadcast %25 : vector<8x1xf32> to vector<8x6xf32>
    %28 = vector.broadcast %26 : vector<1x6xf32> to vector<8x6xf32>
    %29 = arith.mulf %27, %28 : vector<8x6xf32>
    %30 = arith.addf %24, %29 : vector<8x6xf32>
    %c0_18 = arith.constant 0 : index
    %c0_19 = arith.constant 0 : index
    %31 = vector.load %arg9[%c0_18, %c0_19] : memref<1x6xf32, #tpu.memory_space<vmem>>, vector<1x6xf32>
    %32 = vector.broadcast %31 : vector<1x6xf32> to vector<8x6xf32>
    %33 = arith.addf %30, %32 : vector<8x6xf32>
    %cst_20 = arith.constant 0.000000e+00 : f32
    %34 = vector.broadcast %cst_20 : f32 to vector<8x6xf32>
    %35 = arith.maximumf %33, %34 : vector<8x6xf32>
    %c0_21 = arith.constant 0 : index
    %c0_22 = arith.constant 0 : index
    %36 = vector.load %arg10[%c0_21, %c0_22] : memref<6x4xf32, #tpu.memory_space<vmem>>, vector<6x4xf32>
    %cst_23 = arith.constant dense<0.000000e+00> : vector<8x4xf32>
    %37 = tpu.matmul %35, %36, %cst_23 {dimension_numbers = #tpu.dot_dimension_numbers<[1], [0], [0], [1], [0, 0, 1, 1], [], []>} : vector<8x6xf32>, vector<6x4xf32>, vector<8x4xf32> -> vector<8x4xf32>
    %c0_24 = arith.constant 0 : index
    %c0_25 = arith.constant 0 : index
    %38 = vector.load %arg11[%c0_24, %c0_25] : memref<1x4xf32, #tpu.memory_space<vmem>>, vector<1x4xf32>
    %39 = vector.broadcast %38 : vector<1x4xf32> to vector<8x4xf32>
    %40 = arith.addf %37, %39 : vector<8x4xf32>
    %41 = tpu.concatenate %15, %40 in 1 : vector<8x18xf32>, vector<8x4xf32> -> vector<8x22xf32>
    %c0_26 = arith.constant 0 : index
    %c0_27 = arith.constant 0 : index
    %42 = vector.load %arg12[%c0_26, %c0_27] : memref<8x22xf32, #tpu.memory_space<vmem>>, vector<8x22xf32>
    tpu.vector_store %arg12[%c0_26, %c0_27], %41 {strides = array<i32>} : memref<8x22xf32, #tpu.memory_space<vmem>>, vector<8x22xf32>,
    return
  }
  func.func @transform_0(%arg0: i32) -> (i32, i32) {
    %c0_i32 = arith.constant 0 : i32
    %c0_i32_0 = arith.constant 0 : i32
    return %arg0, %c0_i32 : i32, i32
  }
  func.func @transform_1(%arg0: i32) -> (i32, i32) {
    %c0_i32 = arith.constant 0 : i32
    %c0_i32_0 = arith.constant 0 : i32
    return %arg0, %c0_i32 : i32, i32
  }
  func.func @transform_2(%arg0: i32) -> (i32, i32) {
    %c0_i32 = arith.constant 0 : i32
    %c0_i32_0 = arith.constant 0 : i32
    %c0_i32_1 = arith.constant 0 : i32
    return %c0_i32, %c0_i32_0 : i32, i32
  }
  func.func @transform_3(%arg0: i32) -> (i32, i32) {
    %c0_i32 = arith.constant 0 : i32
    %c0_i32_0 = arith.constant 0 : i32
    %c0_i32_1 = arith.constant 0 : i32
    return %c0_i32, %c0_i32_0 : i32, i32
  }
  func.func @transform_4(%arg0: i32) -> (i32, i32) {
    %c0_i32 = arith.constant 0 : i32
    %c0_i32_0 = arith.constant 0 : i32
    %c0_i32_1 = arith.constant 0 : i32
    return %c0_i32, %c0_i32_0 : i32, i32
  }
  func.func @transform_5(%arg0: i32) -> (i32, i32) {
    %c0_i32 = arith.constant 0 : i32
    %c0_i32_0 = arith.constant 0 : i32
    %c0_i32_1 = arith.constant 0 : i32
    return %c0_i32, %c0_i32_0 : i32, i32
  }
  func.func @transform_6(%arg0: i32) -> (i32, i32) {
    %c0_i32 = arith.constant 0 : i32
    %c0_i32_0 = arith.constant 0 : i32
    %c0_i32_1 = arith.constant 0 : i32
    return %c0_i32, %c0_i32_0 : i32, i32
  }
  func.func @transform_7(%arg0: i32) -> (i32, i32) {
    %c0_i32 = arith.constant 0 : i32
    %c0_i32_0 = arith.constant 0 : i32
    %c0_i32_1 = arith.constant 0 : i32
    return %c0_i32, %c0_i32_0 : i32, i32
  }
  func.func @transform_8(%arg0: i32) -> (i32, i32) {
    %c0_i32 = arith.constant 0 : i32
    %c0_i32_0 = arith.constant 0 : i32
    %c0_i32_1 = arith.constant 0 : i32
    return %c0_i32, %c0_i32_0 : i32, i32
  }
  func.func @transform_9(%arg0: i32) -> (i32, i32) {
    %c0_i32 = arith.constant 0 : i32
    %c0_i32_0 = arith.constant 0 : i32
    %c0_i32_1 = arith.constant 0 : i32
    return %c0_i32, %c0_i32_0 : i32, i32
  }
  func.func @transform_10(%arg0: i32) -> (i32, i32) {
    %c0_i32 = arith.constant 0 : i32
    %c0_i32_0 = arith.constant 0 : i32
    %c0_i32_1 = arith.constant 0 : i32
    return %c0_i32, %c0_i32_0 : i32, i32
  }
  func.func @transform_11(%arg0: i32) -> (i32, i32) {
    %c0_i32 = arith.constant 0 : i32
    %c0_i32_0 = arith.constant 0 : i32
    return %arg0, %c0_i32 : i32, i32
  }
}

</mosaic_0001>

<llo_original>
// kernel: actor_forward.1
$region0: #{actor_forward.1}
  #allocation0 [shape = 'u32[]', space=smem, size = 0x4, offset = 0x4, fixed_abs, tag = 'smem constant byte address 0x4 - core index']
  #allocation1 [shape = 'u32[144,128]{1,0:T(1,128)}', space=vmem, size = 0x12000, scoped, tag = 'internal scratch']
  %s0 = inlined_call_operand.vmem [shape: f32[12,261], index: 0, kind: input, shape index: {}]
  %s1 = inlined_call_operand.vmem [shape: f32[12,2], index: 1, kind: input, shape index: {}]
  %s2 = inlined_call_operand.hbm [shape: bf16[261,100], index: 2, kind: input, shape index: {}]
  %s3 = inlined_call_operand.vmem [shape: f32[1,100], index: 3, kind: input, shape index: {}]
  %s4 = inlined_call_operand.vmem [shape: bf16[100,18], index: 4, kind: input, shape index: {}]
  %s5 = inlined_call_operand.vmem [shape: f32[1,18], index: 5, kind: input, shape index: {}]
  %s6 = inlined_call_operand.vmem [shape: f32[18,6], index: 6, kind: input, shape index: {}]
  %s7 = inlined_call_operand.vmem [shape: f32[2,6], index: 7, kind: input, shape index: {}]
  %s8 = inlined_call_operand.vmem [shape: f32[1,6], index: 8, kind: input, shape index: {}]
  %s9 = inlined_call_operand.vmem [shape: f32[6,4], index: 9, kind: input, shape index: {}]
  %s10 = inlined_call_operand.vmem [shape: f32[1,4], index: 10, kind: input, shape index: {}]
  %s11 = inlined_call_operand.vmem [shape: f32[12,22], index: 11, kind: output, shape index: {}]
  %s12 = sld [smem:[#allocation0]]
  $region81: #{actor_forward.1} parent=0
    _
  %s14 = ssub.s32 1, %s12
  %s15 = scalar_select 0, %s14, %s12
  $region1: #{actor_forward.1} parent=0
    #allocation2 [shape = 'u8[67584]{0}', space=vmem, size = 0x10800, scoped, tag = 'input window, operand 2, single buffered']
    #allocation3 [shape = 's32[2]{0}', space=sflag, size = 0x8, scoped, tag = 'scoped memory for actor_forward.1']
    %16 = vsyncpa [#allocation3], 0
    loop: start=0, step=1, limit=4
    $region2: #{actor_forward.1} parent=1 // loop_pre_header
      _
    $region3: #{actor_forward.1} parent=1 // loop_header
      %s18 = sphi 0, %s22
      %p19 = scmp.ge.s32.totalorder %s18, 4
      %s28 = sphi 0, %s30
      %s31 = sphi 0, %s28
      %s32 = sphi 0, %s31
      %s48 = sphi 0, %s32
      %s54 = sphi 0, %s56
      %s57 = sphi 0, %s54
      %s58 = sphi 0, %s57
      %s74 = sphi 0, %s58
      %s78 = sphi 0, %s78
      %s80 = sphi 0, %s78
      %s81 = sphi 0, %s80
      %s95 = sphi 0, %s81
      %s99 = sphi 0, %s99
      %s101 = sphi 0, %s99
      %s102 = sphi 0, %s101
      %s116 = sphi 0, %s102
      %s120 = sphi 0, %s120
      %s122 = sphi 0, %s120
      %s123 = sphi 0, %s122
      %s137 = sphi 0, %s123
      %s141 = sphi 0, %s141
      %s143 = sphi 0, %s141
      %s144 = sphi 0, %s143
      %s158 = sphi 0, %s144
      %s162 = sphi 0, %s162
      %s164 = sphi 0, %s162
      %s165 = sphi 0, %s164
      %s179 = sphi 0, %s165
      %s183 = sphi 0, %s183
      %s185 = sphi 0, %s183
      %s186 = sphi 0, %s185
      %s200 = sphi 0, %s186
      %s204 = sphi 0, %s204
      %s206 = sphi 0, %s204
      %s207 = sphi 0, %s206
      %s221 = sphi 0, %s207
      %s225 = sphi 0, %s225
      %s227 = sphi 0, %s225
      %s228 = sphi 0, %s227
      %s242 = sphi 0, %s228
      %s246 = sphi 0, %s246
      %s248 = sphi 0, %s246
      %s249 = sphi 0, %s248
      %s263 = sphi 0, %s249
      %s269 = sphi 0, %s271
      %s272 = sphi 0, %s269
      %s273 = sphi 0, %s272
      %s289 = sphi 0, %s273
    $region4: #{actor_forward.1} parent=1 // loop_header_branch
      %21 = sbr.rel (%p19) target = $region8
    $region5: #{actor_forward.1} parent=1 // loop_body
      %s23 = ssub.s32 %s18, 1
      %s24 = ssub.s32 %s18, 2
      %s25 = sadd.s32 %s18, 1
      %s26 = ssub.s32 %s18, %s25
      %p27 = scmp.eq.s32.totalorder %s26, 0
      %s29 = sadd.s32 %s28, 1
      %s30 = scalar_select %p27, %s28, %s29
      %p33 = pneg %p27
      %p34 = scmp.eq.s32.totalorder %s18, 1
      %p35 = por %p33, %p34
      %p36 = scmp.ne.s32.totalorder %s28, %s31
      %p37 = scmp.eq.s32.totalorder %s18, 0
      %p38 = por %p36, %p37
      %p39 = scmp.ne.s32.totalorder %s28, %s31
      %p40 = scmp.eq.s32.totalorder %s23, 1
      %p41 = por %p39, %p40
      %p42 = scmp.ne.s32.totalorder %s31, %s32
      %p43 = scmp.eq.s32.totalorder %s23, 0
      %p44 = por %p42, %p43
      %p45 = scmp.ne.s32.totalorder %s31, %s32
      %p46 = scmp.eq.s32.totalorder %s24, 1
      %p47 = por %p45, %p46
      %p49 = scmp.ne.s32.totalorder %s32, %s48
      %p50 = scmp.eq.s32.totalorder %s24, 0
      %p51 = por %p49, %p50
      %s52 = ssub.s32 %s18, %s25
      %p53 = scmp.eq.s32.totalorder %s52, 0
      %s55 = sadd.s32 %s54, 1
      %s56 = scalar_select %p53, %s54, %s55
      %p59 = pneg %p53
      %p60 = scmp.eq.s32.totalorder %s18, 1
      %p61 = por %p59, %p60
      %p62 = scmp.ne.s32.totalorder %s54, %s57
      %p63 = scmp.eq.s32.totalorder %s18, 0
      %p64 = por %p62, %p63
      %p65 = scmp.ne.s32.totalorder %s54, %s57
      %p66 = scmp.eq.s32.totalorder %s23, 1
      %p67 = por %p65, %p66
      %p68 = scmp.ne.s32.totalorder %s57, %s58
      %p69 = scmp.eq.s32.totalorder %s23, 0
      %p70 = por %p68, %p69
      %p71 = scmp.ne.s32.totalorder %s57, %s58
      %p72 = scmp.eq.s32.totalorder %s24, 1
      %p73 = por %p71, %p72
      %p75 = scmp.ne.s32.totalorder %s58, %s74
      %p76 = scmp.eq.s32.totalorder %s24, 0
      %p77 = por %p75, %p76
      %s79 = sadd.s32 %s78, 1
      %p82 = scmp.eq.s32.totalorder %s18, 1
      %p83 = scmp.ne.s32.totalorder %s78, %s80
      %p84 = scmp.eq.s32.totalorder %s18, 0
      %p85 = por %p83, %p84
      %p86 = scmp.ne.s32.totalorder %s78, %s80
      %p87 = scmp.eq.s32.totalorder %s23, 1
      %p88 = por %p86, %p87
      %p89 = scmp.ne.s32.totalorder %s80, %s81
      %p90 = scmp.eq.s32.totalorder %s23, 0
      %p91 = por %p89, %p90
      %p92 = scmp.ne.s32.totalorder %s80, %s81
      %p93 = scmp.eq.s32.totalorder %s24, 1
      %p94 = por %p92, %p93
      %p96 = scmp.ne.s32.totalorder %s81, %s95
      %p97 = scmp.eq.s32.totalorder %s24, 0
      %p98 = por %p96, %p97
      %s100 = sadd.s32 %s99, 1
      %p103 = scmp.eq.s32.totalorder %s18, 1
      %p104 = scmp.ne.s32.totalorder %s99, %s101
      %p105 = scmp.eq.s32.totalorder %s18, 0
      %p106 = por %p104, %p105
      %p107 = scmp.ne.s32.totalorder %s99, %s101
      %p108 = scmp.eq.s32.totalorder %s23, 1
      %p109 = por %p107, %p108
      %p110 = scmp.ne.s32.totalorder %s101, %s102
      %p111 = scmp.eq.s32.totalorder %s23, 0
      %p112 = por %p110, %p111
      %p113 = scmp.ne.s32.totalorder %s101, %s102
      %p114 = scmp.eq.s32.totalorder %s24, 1
      %p115 = por %p113, %p114
      %p117 = scmp.ne.s32.totalorder %s102, %s116
      %p118 = scmp.eq.s32.totalorder %s24, 0
      %p119 = por %p117, %p118
      %s121 = sadd.s32 %s120, 1
      %p124 = scmp.eq.s32.totalorder %s18, 1
      %p125 = scmp.ne.s32.totalorder %s120, %s122
      %p126 = scmp.eq.s32.totalorder %s18, 0
      %p127 = por %p125, %p126
      %p128 = scmp.ne.s32.totalorder %s120, %s122
      %p129 = scmp.eq.s32.totalorder %s23, 1
      %p130 = por %p128, %p129
      %p131 = scmp.ne.s32.totalorder %s122, %s123
      %p132 = scmp.eq.s32.totalorder %s23, 0
      %p133 = por %p131, %p132
      %p134 = scmp.ne.s32.totalorder %s122, %s123
      %p135 = scmp.eq.s32.totalorder %s24, 1
      %p136 = por %p134, %p135
      %p138 = scmp.ne.s32.totalorder %s123, %s137
      %p139 = scmp.eq.s32.totalorder %s24, 0
      %p140 = por %p138, %p139
      %s142 = sadd.s32 %s141, 1
      %p145 = scmp.eq.s32.totalorder %s18, 1
      %p146 = scmp.ne.s32.totalorder %s141, %s143
      %p147 = scmp.eq.s32.totalorder %s18, 0
      %p148 = por %p146, %p147
      %p149 = scmp.ne.s32.totalorder %s141, %s143
      %p150 = scmp.eq.s32.totalorder %s23, 1
      %p151 = por %p149, %p150
      %p152 = scmp.ne.s32.totalorder %s143, %s144
      %p153 = scmp.eq.s32.totalorder %s23, 0
      %p154 = por %p152, %p153
      %p155 = scmp.ne.s32.totalorder %s143, %s144
      %p156 = scmp.eq.s32.totalorder %s24, 1
      %p157 = por %p155, %p156
      %p159 = scmp.ne.s32.totalorder %s144, %s158
      %p160 = scmp.eq.s32.totalorder %s24, 0
      %p161 = por %p159, %p160
      %s163 = sadd.s32 %s162, 1
      %p166 = scmp.eq.s32.totalorder %s18, 1
      %p167 = scmp.ne.s32.totalorder %s162, %s164
      %p168 = scmp.eq.s32.totalorder %s18, 0
      %p169 = por %p167, %p168
      %p170 = scmp.ne.s32.totalorder %s162, %s164
      %p171 = scmp.eq.s32.totalorder %s23, 1
      %p172 = por %p170, %p171
      %p173 = scmp.ne.s32.totalorder %s164, %s165
      %p174 = scmp.eq.s32.totalorder %s23, 0
      %p175 = por %p173, %p174
      %p176 = scmp.ne.s32.totalorder %s164, %s165
      %p177 = scmp.eq.s32.totalorder %s24, 1
      %p178 = por %p176, %p177
      %p180 = scmp.ne.s32.totalorder %s165, %s179
      %p181 = scmp.eq.s32.totalorder %s24, 0
      %p182 = por %p180, %p181
      %s184 = sadd.s32 %s183, 1
      %p187 = scmp.eq.s32.totalorder %s18, 1
      %p188 = scmp.ne.s32.totalorder %s183, %s185
      %p189 = scmp.eq.s32.totalorder %s18, 0
      %p190 = por %p188, %p189
      %p191 = scmp.ne.s32.totalorder %s183, %s185
      %p192 = scmp.eq.s32.totalorder %s23, 1
      %p193 = por %p191, %p192
      %p194 = scmp.ne.s32.totalorder %s185, %s186
      %p195 = scmp.eq.s32.totalorder %s23, 0
      %p196 = por %p194, %p195
      %p197 = scmp.ne.s32.totalorder %s185, %s186
      %p198 = scmp.eq.s32.totalorder %s24, 1
      %p199 = por %p197, %p198
      %p201 = scmp.ne.s32.totalorder %s186, %s200
      %p202 = scmp.eq.s32.totalorder %s24, 0
      %p203 = por %p201, %p202
      %s205 = sadd.s32 %s204, 1
      %p208 = scmp.eq.s32.totalorder %s18, 1
      %p209 = scmp.ne.s32.totalorder %s204, %s206
      %p210 = scmp.eq.s32.totalorder %s18, 0
      %p211 = por %p209, %p210
      %p212 = scmp.ne.s32.totalorder %s204, %s206
      %p213 = scmp.eq.s32.totalorder %s23, 1
      %p214 = por %p212, %p213
      %p215 = scmp.ne.s32.totalorder %s206, %s207
      %p216 = scmp.eq.s32.totalorder %s23, 0
      %p217 = por %p215, %p216
      %p218 = scmp.ne.s32.totalorder %s206, %s207
      %p219 = scmp.eq.s32.totalorder %s24, 1
      %p220 = por %p218, %p219
      %p222 = scmp.ne.s32.totalorder %s207, %s221
      %p223 = scmp.eq.s32.totalorder %s24, 0
      %p224 = por %p222, %p223
      %s226 = sadd.s32 %s225, 1
      %p229 = scmp.eq.s32.totalorder %s18, 1
      %p230 = scmp.ne.s32.totalorder %s225, %s227
      %p231 = scmp.eq.s32.totalorder %s18, 0
      %p232 = por %p230, %p231
      %p233 = scmp.ne.s32.totalorder %s225, %s227
      %p234 = scmp.eq.s32.totalorder %s23, 1
      %p235 = por %p233, %p234
      %p236 = scmp.ne.s32.totalorder %s227, %s228
      %p237 = scmp.eq.s32.totalorder %s23, 0
      %p238 = por %p236, %p237
      %p239 = scmp.ne.s32.totalorder %s227, %s228
      %p240 = scmp.eq.s32.totalorder %s24, 1
      %p241 = por %p239, %p240
      %p243 = scmp.ne.s32.totalorder %s228, %s242
      %p244 = scmp.eq.s32.totalorder %s24, 0
      %p245 = por %p243, %p244
      %s247 = sadd.s32 %s246, 1
      %p250 = scmp.eq.s32.totalorder %s18, 1
      %p251 = scmp.ne.s32.totalorder %s246, %s248
      %p252 = scmp.eq.s32.totalorder %s18, 0
      %p253 = por %p251, %p252
      %p254 = scmp.ne.s32.totalorder %s246, %s248
      %p255 = scmp.eq.s32.totalorder %s23, 1
      %p256 = por %p254, %p255
      %p257 = scmp.ne.s32.totalorder %s248, %s249
      %p258 = scmp.eq.s32.totalorder %s23, 0
      %p259 = por %p257, %p258
      %p260 = scmp.ne.s32.totalorder %s248, %s249
      %p261 = scmp.eq.s32.totalorder %s24, 1
      %p262 = por %p260, %p261
      %p264 = scmp.ne.s32.totalorder %s249, %s263
      %p265 = scmp.eq.s32.totalorder %s24, 0
      %p266 = por %p264, %p265
      %s267 = ssub.s32 %s18, %s25
      %p268 = scmp.eq.s32.totalorder %s267, 0
      %s270 = sadd.s32 %s269, 1
      %s271 = scalar_select %p268, %s269, %s270
      %p274 = pneg %p268
      %p275 = scmp.eq.s32.totalorder %s18, 1
      %p276 = por %p274, %p275
      %p277 = scmp.ne.s32.totalorder %s269, %s272
      %p278 = scmp.eq.s32.totalorder %s18, 0
      %p279 = por %p277, %p278
      %p280 = scmp.ne.s32.totalorder %s269, %s272
      %p281 = scmp.eq.s32.totalorder %s23, 1
      %p282 = por %p280, %p281
      %p283 = scmp.ne.s32.totalorder %s272, %s273
      %p284 = scmp.eq.s32.totalorder %s23, 0
      %p285 = por %p283, %p284
      %p286 = scmp.ne.s32.totalorder %s272, %s273
      %p287 = scmp.eq.s32.totalorder %s24, 1
      %p288 = por %p286, %p287
      %p290 = scmp.ne.s32.totalorder %s273, %s289
      %p291 = scmp.eq.s32.totalorder %s24, 0
      %p292 = por %p290, %p291
      %p293 = scmp.le.s32.totalorder 1, %s18
      %p294 = scmp.lt.s32.totalorder %s18, 3
      %p295 = pnand %p293, %p294
      %p296 = pneg %p295
      // Predicated region
      $region9: #{actor_forward.1} parent=5 // pred_check
        _
      $region10: #{actor_forward.1} parent=5 // pred_check_branch
        %298 = sbr.rel (%p295) target = $region12
      $region11: #{actor_forward.1} parent=5 // pred_region
        %s299 = ssub.s32 %s18, 1
        // Predicated region
        $region13: #{actor_forward.1} parent=11 // pred_check
          %p300 = pneg %p91
        $region14: #{actor_forward.1} parent=11 // pred_check_branch
          %302 = sbr.rel (%p300) target = $region16
        $region15: #{actor_forward.1} parent=11 // pred_region
          %s304 = ssub.s32 2112, 2112
          %305 = vsyncadd [#allocation3], %s304
          %s306 = sshll.u32 [#allocation2], 4
          %s307 = int_to_ptr.vmem [resolvable:$true] %s306
          %312 = dma.hbm_to_vmem [thread:$0]  %s2, 2112, %s307, [#allocation3], 64, 64, 4
        $region16: #{actor_forward.1} parent=11 // pred_fallthru
          _
        // Predicated region
        $region17: #{actor_forward.1} parent=11 // pred_check
          %p313 = pneg %p112
        $region18: #{actor_forward.1} parent=11 // pred_check_branch
          %315 = sbr.rel (%p313) target = $region20
        $region19: #{actor_forward.1} parent=11 // pred_region
          _
        $region20: #{actor_forward.1} parent=11 // pred_fallthru
          _
        // Predicated region
        $region21: #{actor_forward.1} parent=11 // pred_check
          %p316 = pneg %p133
        $region22: #{actor_forward.1} parent=11 // pred_check_branch
          %318 = sbr.rel (%p316) target = $region24
        $region23: #{actor_forward.1} parent=11 // pred_region
          _
        $region24: #{actor_forward.1} parent=11 // pred_fallthru
          _
        // Predicated region
        $region25: #{actor_forward.1} parent=11 // pred_check
          %p319 = pneg %p154
        $region26: #{actor_forward.1} parent=11 // pred_check_branch
          %321 = sbr.rel (%p319) target = $region28
        $region27: #{actor_forward.1} parent=11 // pred_region
          _
        $region28: #{actor_forward.1} parent=11 // pred_fallthru
          _
        // Predicated region
        $region29: #{actor_forward.1} parent=11 // pred_check
          %p322 = pneg %p175
        $region30: #{actor_forward.1} parent=11 // pred_check_branch
          %324 = sbr.rel (%p322) target = $region32
        $region31: #{actor_forward.1} parent=11 // pred_region
          _
        $region32: #{actor_forward.1} parent=11 // pred_fallthru
          _
        // Predicated region
        $region33: #{actor_forward.1} parent=11 // pred_check
          %p325 = pneg %p196
        $region34: #{actor_forward.1} parent=11 // pred_check_branch
          %327 = sbr.rel (%p325) target = $region36
        $region35: #{actor_forward.1} parent=11 // pred_region
          _
        $region36: #{actor_forward.1} parent=11 // pred_fallthru
          _
        // Predicated region
        $region37: #{actor_forward.1} parent=11 // pred_check
          %p328 = pneg %p217
        $region38: #{actor_forward.1} parent=11 // pred_check_branch
          %330 = sbr.rel (%p328) target = $region40
        $region39: #{actor_forward.1} parent=11 // pred_region
          _
        $region40: #{actor_forward.1} parent=11 // pred_fallthru
          _
        // Predicated region
        $region41: #{actor_forward.1} parent=11 // pred_check
          %p331 = pneg %p238
        $region42: #{actor_forward.1} parent=11 // pred_check_branch
          %333 = sbr.rel (%p331) target = $region44
        $region43: #{actor_forward.1} parent=11 // pred_region
          _
        $region44: #{actor_forward.1} parent=11 // pred_fallthru
          _
        // Predicated region
        $region45: #{actor_forward.1} parent=11 // pred_check
          %p334 = pneg %p259
        $region46: #{actor_forward.1} parent=11 // pred_check_branch
          %336 = sbr.rel (%p334) target = $region48
        $region47: #{actor_forward.1} parent=11 // pred_region
          _
        $region48: #{actor_forward.1} parent=11 // pred_fallthru
          _
      $region12: #{actor_forward.1} parent=5 // pred_fallthru
        _
      %p337 = scmp.lt.s32.totalorder %s18, 2
      // Predicated region
      $region49: #{actor_forward.1} parent=5 // pred_check
        %p338 = pneg %p337
      $region50: #{actor_forward.1} parent=5 // pred_check_branch
        %340 = sbr.rel (%p338) target = $region52
      $region51: #{actor_forward.1} parent=5 // pred_region
        // Predicated region
        $region53: #{actor_forward.1} parent=51 // pred_check
          %p341 = pneg %p38
        $region54: #{actor_forward.1} parent=51 // pred_check_branch
          %343 = sbr.rel (%p341) target = $region56
        $region55: #{actor_forward.1} parent=51 // pred_region
          %p344 = scmp.lt.s32.totalorder %s18, 1
          %s345 = scalar_select %p344, %s18, 1
          %s346 = smul.addr %s345, 3
          %s347 = smul.addr %s346, 8
          %s348 = scalar_lea.vmem %s0, %s347
        $region56: #{actor_forward.1} parent=51 // pred_fallthru
          _
        // Predicated region
        $region57: #{actor_forward.1} parent=51 // pred_check
          %p349 = pneg %p64
        $region58: #{actor_forward.1} parent=51 // pred_check_branch
          %351 = sbr.rel (%p349) target = $region60
        $region59: #{actor_forward.1} parent=51 // pred_region
          %p352 = scmp.lt.s32.totalorder %s18, 1
          %s353 = scalar_select %p352, %s18, 1
          %s354 = smul.addr %s353, 8
          %s355 = scalar_lea.vmem %s1, %s354
        $region60: #{actor_forward.1} parent=51 // pred_fallthru
          _
      $region52: #{actor_forward.1} parent=5 // pred_fallthru
        _
      %p356 = scmp.le.s32.totalorder 1, %s18
      %p357 = scmp.lt.s32.totalorder %s18, 3
      %p358 = pnand %p356, %p357
      %p359 = pneg %p358
      // Predicated region
      $region61: #{actor_forward.1} parent=5 // pred_check
        _
      $region62: #{actor_forward.1} parent=5 // pred_check_branch
        %361 = sbr.rel (%p358) target = $region64
      $region63: #{actor_forward.1} parent=5 // pred_region
        %s362 = ssub.s32 %s18, 1
        // Predicated region
        $region65: #{actor_forward.1} parent=63 // pred_check
          %p363 = pneg %p91
        $region66: #{actor_forward.1} parent=63 // pred_check_branch
          %365 = sbr.rel (%p363) target = $region68
        $region67: #{actor_forward.1} parent=63 // pred_region
          %366 = dma.done [#allocation3], 2112
        $region68: #{actor_forward.1} parent=63 // pred_fallthru
          _
        %p367 = scmp.lt.s32.totalorder %s23, 1
        %s368 = scalar_select %p367, %s23, 1
        %s369 = smul.addr %s368, 3
        %s370 = smul.addr %s369, 8
        %s371 = scalar_lea.vmem %s0, %s370
        %p372 = pneg %p44
        %p373 = pneg %p41
        %p374 = scmp.lt.s32.totalorder %s23, 1
        %s375 = scalar_select %p374, %s23, 1
        %s376 = smul.addr %s375, 8
        %s377 = scalar_lea.vmem %s1, %s376
        %p378 = pneg %p70
        %p379 = pneg %p67
        %p380 = pneg %p91
        %p381 = pneg %p88
        %p382 = pneg %p112
        %p383 = pneg %p109
        %p384 = pneg %p133
        %p385 = pneg %p130
        %p386 = pneg %p154
        %p387 = pneg %p151
        %p388 = pneg %p175
        %p389 = pneg %p172
        %p390 = pneg %p196
        %p391 = pneg %p193
        %p392 = pneg %p217
        %p393 = pneg %p214
        %p394 = pneg %p238
        %p395 = pneg %p235
        %p396 = pneg %p259
        %p397 = pneg %p256
        %p398 = pneg %p285
        %p399 = pneg %p282
        %p400 = scmp.lt.s32.totalorder %s23, 1
        %s401 = scalar_select %p400, %s23, 1
        %s402 = smul.addr %s401, 8
        %s403 = scalar_lea.vmem %s11, %s402
        %p404 = scmp.lt.s32.totalorder %s23, 1
        %s405 = scalar_select %p404, %s23, 1
        %s406 = smul.addr %s405, 3
        %s407 = smul.addr %s406, 8
        %s408 = scalar_lea.vmem %s0, %s407
        %p409 = scmp.lt.s32.totalorder %s23, 1
        %s410 = scalar_select %p409, %s23, 1
        %s411 = smul.addr %s410, 8
        %s412 = scalar_lea.vmem %s1, %s411
        %p413 = scmp.lt.s32.totalorder %s23, 1
        %s414 = scalar_select %p413, %s23, 1
        %s415 = smul.addr %s414, 8
        %s416 = scalar_lea.vmem %s11, %s415
        %v418 = vld [vmem:[%s408] sm:$0xff]
        %v419 = vld [vmem:[%s408 + $0x8] sm:$0xff]
        %v420 = vld [vmem:[%s408 + $0x10] sm:$0xff]
        %v421 = vpack.c.bf16 %v418, %v418
        %v422 = vpack.c.bf16 %v419, %v419
        %v423 = vpack.c.bf16 %v420, %v420
        %v424 = vld [vmem:[%s412] sm:$0xff]
        %v425 = vld [vmem:[#allocation2] sm:$0xf]
        %v426 = vld [vmem:[#allocation2 + $0x4] sm:$0xf]
        %v427 = vld [vmem:[#allocation2 + $0x8] sm:$0xf]
        %v428 = vld [vmem:[#allocation2 + $0xc] sm:$0xf]
        %v429 = vld [vmem:[#allocation2 + $0x10] sm:$0xf]
        %v430 = vld [vmem:[#allocation2 + $0x14] sm:$0xf]
        %v431 = vld [vmem:[#allocation2 + $0x18] sm:$0xf]
        %v432 = vld [vmem:[#allocation2 + $0x1c] sm:$0xf]
        %v433 = vld [vmem:[#allocation2 + $0x20] sm:$0xf]
        %v434 = vld [vmem:[#allocation2 + $0x24] sm:$0xf]
        %v435 = vld [vmem:[#allocation2 + $0x28] sm:$0xf]
        %v436 = vld [vmem:[#allocation2 + $0x2c] sm:$0xf]
        %v437 = vld [vmem:[#allocation2 + $0x30] sm:$0xf]
        %v438 = vld [vmem:[#allocation2 + $0x34] sm:$0xf]
        %v439 = vld [vmem:[#allocation2 + $0x38] sm:$0xf]
        %v440 = vld [vmem:[#allocation2 + $0x3c] sm:$0xf]
        %v441 = vld [vmem:[#allocation2 + $0x40] sm:$0xf]
        %v442 = vld [vmem:[#allocation2 + $0x44] sm:$0xf]
        %v443 = vld [vmem:[#allocation2 + $0x48] sm:$0xf]
        %v444 = vld [vmem:[#allocation2 + $0x4c] sm:$0xf]
        %v445 = vld [vmem:[#allocation2 + $0x50] sm:$0xf]
        %v446 = vld [vmem:[#allocation2 + $0x54] sm:$0xf]
        %v447 = vld [vmem:[#allocation2 + $0x58] sm:$0xf]
        %v448 = vld [vmem:[#allocation2 + $0x5c] sm:$0xf]
        %v449 = vld [vmem:[#allocation2 + $0x60] sm:$0xf]
        %v450 = vld [vmem:[#allocation2 + $0x64] sm:$0xf]
        %v451 = vld [vmem:[#allocation2 + $0x68] sm:$0xf]
        %v452 = vld [vmem:[#allocation2 + $0x6c] sm:$0xf]
        %v453 = vld [vmem:[#allocation2 + $0x70] sm:$0xf]
        %v454 = vld [vmem:[#allocation2 + $0x74] sm:$0xf]
        %v455 = vld [vmem:[#allocation2 + $0x78] sm:$0xf]
        %v456 = vld [vmem:[#allocation2 + $0x7c] sm:$0xf]
        %v457 = vld [vmem:[#allocation2 + $0x80] sm:$0x7]
        %v458 = vld [vmem:[%s3] sm:$0x1]
        %v460 = vlaneseq
        %v461 = vshrl.u32 %v460, 7
        %v462 = vsub.s32 0, %v461
        %v463 = vrot.slane %v458, %v462
        %v498 = vunpack.c.l.b16 %v425
        %v499 = vunpack.c.l.b16 %v426
        %v500 = vunpack.c.l.b16 %v427
        %v501 = vunpack.c.l.b16 %v428
        %v502 = vunpack.c.l.b16 %v429
        %v503 = vunpack.c.l.b16 %v430
        %v504 = vunpack.c.l.b16 %v431
        %v505 = vunpack.c.l.b16 %v432
        %v506 = vunpack.c.l.b16 %v433
        %v507 = vunpack.c.l.b16 %v434
        %v508 = vunpack.c.l.b16 %v435
        %v509 = vunpack.c.l.b16 %v436
        %v510 = vunpack.c.l.b16 %v437
        %v511 = vunpack.c.l.b16 %v438
        %v512 = vunpack.c.l.b16 %v439
        %v513 = vunpack.c.l.b16 %v440
        %v514 = vunpack.c.l.b16 %v441
        %v515 = vunpack.c.l.b16 %v442
        %v516 = vunpack.c.l.b16 %v443
        %v517 = vunpack.c.l.b16 %v444
        %v518 = vunpack.c.l.b16 %v445
        %v519 = vunpack.c.l.b16 %v446
        %v520 = vunpack.c.l.b16 %v447
        %v521 = vunpack.c.l.b16 %v448
        %v522 = vunpack.c.l.b16 %v449
        %v523 = vunpack.c.l.b16 %v450
        %v524 = vunpack.c.l.b16 %v451
        %v525 = vunpack.c.l.b16 %v452
        %v526 = vunpack.c.l.b16 %v453
        %v527 = vunpack.c.l.b16 %v454
        %v528 = vunpack.c.l.b16 %v455
        %v529 = vunpack.c.l.b16 %v456
        %v530 = vunpack.c.l.b16 %v457
        %v531 = vpack.c.b16 %v499, %v498
        %v532 = vpack.c.b16 %v501, %v500
        %v533 = vpack.c.b16 %v503, %v502
        %v534 = vpack.c.b16 %v505, %v504
        %v535 = vpack.c.b16 %v507, %v506
        %v536 = vpack.c.b16 %v509, %v508
        %v537 = vpack.c.b16 %v511, %v510
        %v538 = vpack.c.b16 %v513, %v512
        %v539 = vpack.c.b16 %v515, %v514
        %v540 = vpack.c.b16 %v517, %v516
        %v541 = vpack.c.b16 %v519, %v518
        %v542 = vpack.c.b16 %v521, %v520
        %v543 = vpack.c.b16 %v523, %v522
        %v544 = vpack.c.b16 %v525, %v524
        %v545 = vpack.c.b16 %v527, %v526
        %v546 = vpack.c.b16 %v529, %v528
        %v547 = vpack.c.b16 %v530, %v530
        %vm564 = vcmask 39936
        %v566 = vsel %vm564, %v423, 0
        %vm568 = vcmask 1041408
        %vm569 = vcmask 1042432
        %v570 = vsel %vm568, 4294967295, 65535
        %v571 = vsel %vm569, %v570, 0
        %v573 = vand.u32 %v547, %v571
        %575 = vmatprep.subr.bf16.mxu0 0
        %576 = vmatpush1.bf16.msra.mxu0 %v538
        %577 = vmatprep.subr.bf16.mxu0 0
        %578 = vmatpush1.bf16.msra.mxu0 %v537
        %579 = vmatprep.subr.bf16.mxu0 0
        %580 = vmatpush1.bf16.msra.mxu0 %v536
        %581 = vmatprep.subr.bf16.mxu0 0
        %582 = vmatpush1.bf16.msra.mxu0 %v535
        %583 = vmatprep.subr.bf16.mxu0 0
        %584 = vmatpush1.bf16.msra.mxu0 %v534
        %585 = vmatprep.subr.bf16.mxu0 0
        %586 = vmatpush1.bf16.msra.mxu0 %v533
        %587 = vmatprep.subr.bf16.mxu0 0
        %588 = vmatpush1.bf16.msra.mxu0 %v532
        %589 = vmatprep.subr.bf16.mxu0 0
        %590 = vmatpush1.bf16.msra.mxu0 %v531
        %591 = vmatprep.subr.bf16.mxu0 0
        %592 = vmatpush2.bf16.msra.mxu0 %v546
        %593 = vmatprep.subr.bf16.mxu0 0
        %594 = vmatpush2.bf16.msra.mxu0 %v545
        %595 = vmatprep.subr.bf16.mxu0 0
        %596 = vmatpush2.bf16.msra.mxu0 %v544
        %597 = vmatprep.subr.bf16.mxu0 0
        %598 = vmatpush2.bf16.msra.mxu0 %v543
        %599 = vmatprep.subr.bf16.mxu0 0
        %600 = vmatpush2.bf16.msra.mxu0 %v542
        %601 = vmatprep.subr.bf16.mxu0 0
        %602 = vmatpush2.bf16.msra.mxu0 %v541
        %603 = vmatprep.subr.bf16.mxu0 0
        %604 = vmatpush2.bf16.msra.mxu0 %v540
        %605 = vmatprep.subr.bf16.mxu0 0
        %606 = vmatpush2.bf16.msra.mxu0 %v539
        %607 = vmatprep.mubr.bf16.mxu0 %v422
        %608 = vmatmul.mubr.bf16.gmra.mxu0 %v421
        %v609 = vpop.f32.mrf.mxu0
        %v610 = vadd.f32 %v463, %v609
        %v611 = vpop.f32.mrf.mxu0
        %v612 = vpop.f32.mrf.mxu0
        %v613 = vpop.f32.mrf.mxu0
        %614 = vdwg.mxu0
        %615 = vmatprep.subr.bf16.mxu0 0
        %616 = vmatpush1.bf16.msra.mxu0 0
        %617 = vmatprep.subr.bf16.mxu0 0
        %618 = vmatpush1.bf16.msra.mxu0 0
        %619 = vmatprep.subr.bf16.mxu0 0
        %620 = vmatpush1.bf16.msra.mxu0 0
        %621 = vmatprep.subr.bf16.mxu0 0
        %622 = vmatpush1.bf16.msra.mxu0 0
        %623 = vmatprep.subr.bf16.mxu0 0
        %624 = vmatpush1.bf16.msra.mxu0 0
        %625 = vmatprep.subr.bf16.mxu0 0
        %626 = vmatpush1.bf16.msra.mxu0 0
        %627 = vmatprep.subr.bf16.mxu0 0
        %628 = vmatpush1.bf16.msra.mxu0 0
        %629 = vmatprep.subr.bf16.mxu0 0
        %630 = vmatpush1.bf16.msra.mxu0 %v573
        %631 = vmatprep.subr.bf16.mxu0 0
        %632 = vmatpush2.bf16.msra.mxu0 0
        %633 = vmatprep.subr.bf16.mxu0 0
        %634 = vmatpush2.bf16.msra.mxu0 0
        %635 = vmatprep.subr.bf16.mxu0 0
        %636 = vmatpush2.bf16.msra.mxu0 0
        %637 = vmatprep.subr.bf16.mxu0 0
        %638 = vmatpush2.bf16.msra.mxu0 0
        %639 = vmatprep.subr.bf16.mxu0 0
        %640 = vmatpush2.bf16.msra.mxu0 0
        %641 = vmatprep.subr.bf16.mxu0 0
        %642 = vmatpush2.bf16.msra.mxu0 0
        %643 = vmatprep.subr.bf16.mxu0 0
        %644 = vmatpush2.bf16.msra.mxu0 0
        %645 = vmatprep.subr.bf16.mxu0 0
        %646 = vmatpush2.bf16.msra.mxu0 0
        %647 = vmatprep.mubr.bf16.mxu0 0
        %648 = vmatmul.mubr.bf16.gmra.mxu0 %v566
        %v649 = vpop.f32.mrf.mxu0
        %v650 = vadd.f32 %v610, %v649
        %v651 = vpop.f32.mrf.mxu0
        %v652 = vpop.f32.mrf.mxu0
        %v653 = vpop.f32.mrf.mxu0
        %654 = vdwg.mxu0
        %v655 = vmax.f32 %v650, 0.0
        %v656 = vpack.c.bf16 %v655, %v655
        %v657 = vld [vmem:[%s4] sm:$0xf]
        %v658 = vld [vmem:[%s4 + $0x4] sm:$0xf]
        %v659 = vld [vmem:[%s4 + $0x8] sm:$0xf]
        %v660 = vld [vmem:[%s4 + $0xc] sm:$0xf]
        %v661 = vld [vmem:[%s4 + $0x10] sm:$0xf]
        %v662 = vld [vmem:[%s4 + $0x14] sm:$0xf]
        %v663 = vld [vmem:[%s4 + $0x18] sm:$0xf]
        %v664 = vld [vmem:[%s4 + $0x1c] sm:$0xf]
        %v665 = vld [vmem:[%s4 + $0x20] sm:$0xf]
        %v666 = vld [vmem:[%s4 + $0x24] sm:$0xf]
        %v667 = vld [vmem:[%s4 + $0x28] sm:$0xf]
        %v668 = vld [vmem:[%s4 + $0x2c] sm:$0xf]
        %v669 = vld [vmem:[%s4 + $0x30] sm:$0x3]
        %v670 = vld [vmem:[%s5] sm:$0x1]
        %v672 = vlaneseq
        %v673 = vshrl.u32 %v672, 7
        %v674 = vsub.s32 0, %v673
        %v675 = vrot.slane %v670, %v674
        %v690 = vunpack.c.l.b16 %v657
        %v691 = vunpack.c.l.b16 %v658
        %v692 = vunpack.c.l.b16 %v659
        %v693 = vunpack.c.l.b16 %v660
        %v694 = vunpack.c.l.b16 %v661
        %v695 = vunpack.c.l.b16 %v662
        %v696 = vunpack.c.l.b16 %v663
        %v697 = vunpack.c.l.b16 %v664
        %v698 = vunpack.c.l.b16 %v665
        %v699 = vunpack.c.l.b16 %v666
        %v700 = vunpack.c.l.b16 %v667
        %v701 = vunpack.c.l.b16 %v668
        %v702 = vunpack.c.l.b16 %v669
        %v703 = vpack.c.b16 %v691, %v690
        %v704 = vpack.c.b16 %v693, %v692
        %v705 = vpack.c.b16 %v695, %v694
        %v706 = vpack.c.b16 %v697, %v696
        %v707 = vpack.c.b16 %v699, %v698
        %v708 = vpack.c.b16 %v701, %v700
        %v709 = vpack.c.b16 %v702, %v702
        %vm716 = vcmask 818176
        %v718 = vsel %vm716, %v656, 0
        %v721 = vsel %vm568, %v709, 0
        %723 = vmatprep.subr.bf16.mxu0 0
        %724 = vmatpush1.bf16.msra.mxu0 0
        %725 = vmatprep.subr.bf16.mxu0 0
        %726 = vmatpush1.bf16.msra.mxu0 %v721
        %727 = vmatprep.subr.bf16.mxu0 0
        %728 = vmatpush1.bf16.msra.mxu0 %v708
        %729 = vmatprep.subr.bf16.mxu0 0
        %730 = vmatpush1.bf16.msra.mxu0 %v707
        %731 = vmatprep.subr.bf16.mxu0 0
        %732 = vmatpush1.bf16.msra.mxu0 %v706
        %733 = vmatprep.subr.bf16.mxu0 0
        %734 = vmatpush1.bf16.msra.mxu0 %v705
        %735 = vmatprep.subr.bf16.mxu0 0
        %736 = vmatpush1.bf16.msra.mxu0 %v704
        %737 = vmatprep.subr.bf16.mxu0 0
        %738 = vmatpush1.bf16.msra.mxu0 %v703
        %739 = vmatprep.subr.bf16.mxu0 0
        %740 = vmatpush2.bf16.msra.mxu0 0
        %741 = vmatprep.subr.bf16.mxu0 0
        %742 = vmatpush2.bf16.msra.mxu0 0
        %743 = vmatprep.subr.bf16.mxu0 0
        %744 = vmatpush2.bf16.msra.mxu0 0
        %745 = vmatprep.subr.bf16.mxu0 0
        %746 = vmatpush2.bf16.msra.mxu0 0
        %747 = vmatprep.subr.bf16.mxu0 0
        %748 = vmatpush2.bf16.msra.mxu0 0
        %749 = vmatprep.subr.bf16.mxu0 0
        %750 = vmatpush2.bf16.msra.mxu0 0
        %751 = vmatprep.subr.bf16.mxu0 0
        %752 = vmatpush2.bf16.msra.mxu0 0
        %753 = vmatprep.subr.bf16.mxu0 0
        %754 = vmatpush2.bf16.msra.mxu0 0
        %755 = vmatprep.mubr.bf16.mxu0 0
        %756 = vmatmul.mubr.bf16.gmra.mxu0 %v718
        %v757 = vpop.f32.mrf.mxu0
        %v758 = vadd.f32 %v675, %v757
        %v759 = vpop.f32.mrf.mxu0
        %v760 = vpop.f32.mrf.mxu0
        %v761 = vpop.f32.mrf.mxu0
        %762 = vdwg.mxu0
        %v763 = vld [vmem:[%s7] sm:$0x3]
        %v764 = vld [vmem:[%s6] sm:$0xff]
        %v765 = vld [vmem:[%s6 + $0x8] sm:$0xff]
        %v766 = vld [vmem:[%s6 + $0x10] sm:$0x3]
        %768 = vset.pattern.permute.xlu0 0
        %769 = vperm.xlu0 %768, %v424
        %v770 = vpop.permute.xlu0 %769
        %v772 = vlaneseq
        %v773 = vshrl.u32 %v772, 7
        %v774 = vsub.s32 0, %v773
        %v775 = vrot.slane %v763, %v774
        %v776 = vmul.f32 %v770, %v775
        %vm777 = vcmask 146432
        %v779 = vsel %vm777, %v758, 0
        %v782 = vsel %vm568, %v766, 0
        %784 = vmatprep.subr.mxu0 0.0
        %785 = vmatpush1.msra.mxu0 0.0
        %786 = vmatprep.subr.mxu0 0.0
        %787 = vmatpush1.msra.mxu0 0.0
        %788 = vmatprep.subr.mxu0 0.0
        %789 = vmatpush1.msra.mxu0 0.0
        %790 = vmatprep.subr.mxu0 0.0
        %791 = vmatpush1.msra.mxu0 0.0
        %792 = vmatprep.subr.mxu0 0.0
        %793 = vmatpush1.msra.mxu0 0.0
        %794 = vmatprep.subr.mxu0 0.0
        %795 = vmatpush1.msra.mxu0 0.0
        %796 = vmatprep.subr.mxu0 0.0
        %797 = vmatpush1.msra.mxu0 0.0
        %798 = vmatprep.subr.mxu0 0.0
        %799 = vmatpush1.msra.mxu0 0.0
        %800 = vmatprep.subr.mxu0 0.0
        %801 = vmatpush1.msra.mxu0 0.0
        %802 = vmatprep.subr.mxu0 0.0
        %803 = vmatpush1.msra.mxu0 0.0
        %804 = vmatprep.subr.mxu0 0.0
        %805 = vmatpush1.msra.mxu0 0.0
        %806 = vmatprep.subr.mxu0 0.0
        %807 = vmatpush1.msra.mxu0 0.0
        %808 = vmatprep.subr.mxu0 0.0
        %809 = vmatpush1.msra.mxu0 0.0
        %810 = vmatprep.subr.mxu0 0.0
        %811 = vmatpush1.msra.mxu0 %v782
        %812 = vmatprep.subr.mxu0 0.0
        %813 = vmatpush1.msra.mxu0 %v765
        %814 = vmatprep.subr.mxu0 0.0
        %815 = vmatpush1.msra.mxu0 %v764
        %816 = vmatprep.subr.mxu0 0.0
        %817 = vmatpush2.msra.mxu0 0.0
        %818 = vmatprep.subr.mxu0 0.0
        %819 = vmatpush2.msra.mxu0 0.0
        %820 = vmatprep.subr.mxu0 0.0
        %821 = vmatpush2.msra.mxu0 0.0
        %822 = vmatprep.subr.mxu0 0.0
        %823 = vmatpush2.msra.mxu0 0.0
        %824 = vmatprep.subr.mxu0 0.0
        %825 = vmatpush2.msra.mxu0 0.0
        %826 = vmatprep.subr.mxu0 0.0
        %827 = vmatpush2.msra.mxu0 0.0
        %828 = vmatprep.subr.mxu0 0.0
        %829 = vmatpush2.msra.mxu0 0.0
        %830 = vmatprep.subr.mxu0 0.0
        %831 = vmatpush2.msra.mxu0 0.0
        %832 = vmatprep.subr.mxu0 0.0
        %833 = vmatpush2.msra.mxu0 0.0
        %834 = vmatprep.subr.mxu0 0.0
        %835 = vmatpush2.msra.mxu0 0.0
        %836 = vmatprep.subr.mxu0 0.0
        %837 = vmatpush2.msra.mxu0 0.0
        %838 = vmatprep.subr.mxu0 0.0
        %839 = vmatpush2.msra.mxu0 0.0
        %840 = vmatprep.subr.mxu0 0.0
        %841 = vmatpush2.msra.mxu0 0.0
        %842 = vmatprep.subr.mxu0 0.0
        %843 = vmatpush2.msra.mxu0 0.0
        %844 = vmatprep.subr.mxu0 0.0
        %845 = vmatpush2.msra.mxu0 0.0
        %846 = vmatprep.subr.mxu0 0.0
        %847 = vmatpush2.msra.mxu0 0.0
        %848 = vmatprep.mubr.f32.mxu0 0.0
        %849 = vmatmul.mubr.f32.gmra.mxu0 %v779
        %v850 = vpop.f32.mrf.mxu0
        %v851 = vadd.f32 %v776, %v850
        %v852 = vpop.f32.mrf.mxu0
        %853 = vdwg.mxu0
        %854 = vset.pattern.permute.xlu0 1
        %855 = vperm.xlu0 %854, %v424
        %v856 = vpop.permute.xlu0 %855
        %v858 = vlaneseq
        %v859 = vshrl.u32 %v858, 7
        %v860 = vsub.s32 1, %v859
        %v861 = vrot.slane %v763, %v860
        %v862 = vmul.f32 %v856, %v861
        %v863 = vadd.f32 %v851, %v862
        %v864 = vld [vmem:[%s8] sm:$0x1]
        %v866 = vlaneseq
        %v867 = vshrl.u32 %v866, 7
        %v868 = vsub.s32 0, %v867
        %v869 = vrot.slane %v864, %v868
        %v871 = vadd.f32 %v863, %v869
        %v872 = vmax.f32 %v871, 0.0
        %v873 = vld [vmem:[%s9] sm:$0x3f]
        %v874 = vld [vmem:[%s10] sm:$0x1]
        %v876 = vlaneseq
        %v877 = vshrl.u32 %v876, 7
        %v878 = vsub.s32 0, %v877
        %v879 = vrot.slane %v874, %v878
        %vm881 = vcmask 48128
        %v883 = vsel %vm881, %v872, 0
        %vm885 = vcmask 1045504
        %v887 = vsel %vm885, %v873, 0
        %889 = vmatprep.subr.mxu0 0.0
        %890 = vmatpush1.msra.mxu0 0.0
        %891 = vmatprep.subr.mxu0 0.0
        %892 = vmatpush1.msra.mxu0 0.0
        %893 = vmatprep.subr.mxu0 0.0
        %894 = vmatpush1.msra.mxu0 0.0
        %895 = vmatprep.subr.mxu0 0.0
        %896 = vmatpush1.msra.mxu0 0.0
        %897 = vmatprep.subr.mxu0 0.0
        %898 = vmatpush1.msra.mxu0 0.0
        %899 = vmatprep.subr.mxu0 0.0
        %900 = vmatpush1.msra.mxu0 0.0
        %901 = vmatprep.subr.mxu0 0.0
        %902 = vmatpush1.msra.mxu0 0.0
        %903 = vmatprep.subr.mxu0 0.0
        %904 = vmatpush1.msra.mxu0 0.0
        %905 = vmatprep.subr.mxu0 0.0
        %906 = vmatpush1.msra.mxu0 0.0
        %907 = vmatprep.subr.mxu0 0.0
        %908 = vmatpush1.msra.mxu0 0.0
        %909 = vmatprep.subr.mxu0 0.0
        %910 = vmatpush1.msra.mxu0 0.0
        %911 = vmatprep.subr.mxu0 0.0
        %912 = vmatpush1.msra.mxu0 0.0
        %913 = vmatprep.subr.mxu0 0.0
        %914 = vmatpush1.msra.mxu0 0.0
        %915 = vmatprep.subr.mxu0 0.0
        %916 = vmatpush1.msra.mxu0 0.0
        %917 = vmatprep.subr.mxu0 0.0
        %918 = vmatpush1.msra.mxu0 0.0
        %919 = vmatprep.subr.mxu0 0.0
        %920 = vmatpush1.msra.mxu0 %v887
        %921 = vmatprep.subr.mxu0 0.0
        %922 = vmatpush2.msra.mxu0 0.0
        %923 = vmatprep.subr.mxu0 0.0
        %924 = vmatpush2.msra.mxu0 0.0
        %925 = vmatprep.subr.mxu0 0.0
        %926 = vmatpush2.msra.mxu0 0.0
        %927 = vmatprep.subr.mxu0 0.0
        %928 = vmatpush2.msra.mxu0 0.0
        %929 = vmatprep.subr.mxu0 0.0
        %930 = vmatpush2.msra.mxu0 0.0
        %931 = vmatprep.subr.mxu0 0.0
        %932 = vmatpush2.msra.mxu0 0.0
        %933 = vmatprep.subr.mxu0 0.0
        %934 = vmatpush2.msra.mxu0 0.0
        %935 = vmatprep.subr.mxu0 0.0
        %936 = vmatpush2.msra.mxu0 0.0
        %937 = vmatprep.subr.mxu0 0.0
        %938 = vmatpush2.msra.mxu0 0.0
        %939 = vmatprep.subr.mxu0 0.0
        %940 = vmatpush2.msra.mxu0 0.0
        %941 = vmatprep.subr.mxu0 0.0
        %942 = vmatpush2.msra.mxu0 0.0
        %943 = vmatprep.subr.mxu0 0.0
        %944 = vmatpush2.msra.mxu0 0.0
        %945 = vmatprep.subr.mxu0 0.0
        %946 = vmatpush2.msra.mxu0 0.0
        %947 = vmatprep.subr.mxu0 0.0
        %948 = vmatpush2.msra.mxu0 0.0
        %949 = vmatprep.subr.mxu0 0.0
        %950 = vmatpush2.msra.mxu0 0.0
        %951 = vmatprep.subr.mxu0 0.0
        %952 = vmatpush2.msra.mxu0 0.0
        %953 = vmatprep.mubr.f32.mxu0 0.0
        %954 = vmatmul.mubr.f32.gmra.mxu0 %v883
        %v955 = vpop.f32.mrf.mxu0
        %v956 = vadd.f32 %v879, %v955
        %v957 = vpop.f32.mrf.mxu0
        %958 = vdwg.mxu0
        %960 = vrot.lane.b32.xlu0 %v956, 18
        %v961 = vpop.permute.xlu0 %960
        %v963 = vsel %vm777, %v758, %v961
        %vm964 = vcmask 179200
        %965 = vst.msk [vmem:[%s416] sm:$0xff] %vm964, %v963
        %p966 = scmp.lt.s32.totalorder %s23, 1
        %s967 = scalar_select %p966, %s23, 1
        %s968 = smul.addr %s967, 8
        %s969 = scalar_lea.vmem %s11, %s968
        // Predicated region
        $region69: #{actor_forward.1} parent=63 // pred_check
          %p970 = pneg %p282
        $region70: #{actor_forward.1} parent=63 // pred_check_branch
          %972 = sbr.rel (%p970) target = $region72
        $region71: #{actor_forward.1} parent=63 // pred_region
          _
        $region72: #{actor_forward.1} parent=63 // pred_fallthru
          _
      $region64: #{actor_forward.1} parent=5 // pred_fallthru
        _
      %p973 = scmp.le.s32.totalorder 2, %s18
      // Predicated region
      $region73: #{actor_forward.1} parent=5 // pred_check
        %p974 = pneg %p973
      $region74: #{actor_forward.1} parent=5 // pred_check_branch
        %976 = sbr.rel (%p974) target = $region76
      $region75: #{actor_forward.1} parent=5 // pred_region
        %s977 = ssub.s32 %s18, 2
        // Predicated region
        $region77: #{actor_forward.1} parent=75 // pred_check
          %p978 = pneg %p288
        $region78: #{actor_forward.1} parent=75 // pred_check_branch
          %980 = sbr.rel (%p978) target = $region80
        $region79: #{actor_forward.1} parent=75 // pred_region
          %p981 = scmp.lt.s32.totalorder %s24, 1
          %s982 = scalar_select %p981, %s24, 1
          %s983 = smul.addr %s982, 8
          %s984 = scalar_lea.vmem %s11, %s983
        $region80: #{actor_forward.1} parent=75 // pred_fallthru
          _
      $region76: #{actor_forward.1} parent=5 // pred_fallthru
        _
    $region6: #{actor_forward.1} parent=1 // loop_footer
      %s22 = sadd.s32 1, %s18
    $region7: #{actor_forward.1} parent=1 // loop_footer_branch
      %17 = sbr.rel target = $region3
    $region8: #{actor_forward.1} parent=1 // loop_exit
      _
    %985 = vsyncpa [#allocation3], 1
    %s986 = scalar_lea.sflag [#allocation3], 1
    %987 = vsyncpa %s986, 1

</llo_original>
